<compile_context>
chip_gen: v5e
topology: v5e:2x2
jax: 0.10.0
libtpu: 0.0.40
codegen_flags: <defaults>
</compile_context>

<pallas_src>
import functools
import math

import jax
import jax.numpy as jnp
from jax.experimental import pallas as pl
from jax.experimental.pallas import tpu as pltpu


# ---------------------------------------------------------------------------
# Kernel 1: fused QKV projection (run once per token — fixes the K/V
# recompute-per-query-tile issue from the review).
# ---------------------------------------------------------------------------
def _qkv_proj_kernel(x_ref, wqkv_ref, q_ref, k_ref, v_ref):
    # x_ref   : (Tr, D) bf16 input rows for this grid step
    # wqkv_ref: (3, D, D) bf16  [Wq * 1/sqrt(H) | Wk | Wv], lane-dense N = nh*H
    # q/k/v   : (Tr, D) bf16 outputs
    x = x_ref[...]
    q_ref[...] = jnp.dot(x, wqkv_ref[0],
                         preferred_element_type=jnp.float32).astype(q_ref.dtype)
    k_ref[...] = jnp.dot(x, wqkv_ref[1],
                         preferred_element_type=jnp.float32).astype(k_ref.dtype)
    v_ref[...] = jnp.dot(x, wqkv_ref[2],
                         preferred_element_type=jnp.float32).astype(v_ref.dtype)


# ---------------------------------------------------------------------------
# Kernel 2: causal flash-style attention + fused output projection.
# ---------------------------------------------------------------------------
def _attn_kernel(q_ref, k_ref, v_ref, wp_ref, bp_ref, o_ref, ocat_ref, *,
                 num_heads: int):
    # q_ref   : (Tq, D)  bf16  query rows for this grid step (all heads)
    # k_ref   : (Cp, D)  bf16  full (padded) context keys   (all heads)
    # v_ref   : (Cp, D)  bf16  full (padded) context values (all heads)
    # wp_ref  : (D, D)   bf16  output projection (W.T), single D-deep matmul
    # bp_ref  : (1, D)   f32   output projection bias
    # o_ref   : (Tq, D)        output tile
    # ocat_ref: (Tq, D)  bf16  VMEM scratch = "concatenated" per-head outputs
    q_all = q_ref[...]                  # (Tq, D) bf16
    Tq, D = q_all.shape
    H = D // num_heads
    qi = pl.program_id(1)
    q_start = qi * Tq

    neg_big = jnp.float32(-1e30)        # finite: no NaN risk on masked entries
    # Local causal mask of the diagonal KV tile (Tk == Tq, same offset as the
    # query tile, so the mask is identical for every qi).
    row = jax.lax.broadcasted_iota(jnp.int32, (Tq, Tq), 0)
    col = jax.lax.broadcasted_iota(jnp.int32, (Tq, Tq), 1)
    diag_mask = row >= col

    # Small static head loop (equivalent to fori_loop(unroll=True) for small
    # nh).  Thanks to the KV tiling the per-head live temporaries are only
    # (Tq, H) + 2x(Tq, 1); for very large nh move heads to a grid axis.
    for h in range(num_heads):
        lo, hi = h * H, (h + 1) * H
        q_h = q_all[:, lo:hi]                                        # (Tq, H)

        def kv_step(off, carry, *, masked, lo=lo, hi=hi, q_h=q_h):
            m, l, acc = carry
            k_t = k_ref[pl.ds(off, Tq), lo:hi]                       # (Tq, H)
            v_t = v_ref[pl.ds(off, Tq), lo:hi]                       # (Tq, H)
            # Contract the shared last dim directly — no k.T relayout.
            s = jax.lax.dot_general(q_h, k_t, (((1,), (1,)), ((), ())),
                                    preferred_element_type=jnp.float32)
            if masked:  # causal mask only on the diagonal KV tile
                s = jnp.where(diag_mask, s, neg_big)
            m_new = jnp.maximum(m, jnp.max(s, axis=-1, keepdims=True))
            a = jnp.exp(m - m_new)
            p = jnp.exp(s - m_new)
            l_new = a * l + jnp.sum(p, axis=-1, keepdims=True)
            acc_new = a * acc + jnp.dot(p.astype(jnp.bfloat16), v_t,
                                        preferred_element_type=jnp.float32)
            return m_new, l_new, acc_new

        carry = (jnp.full((Tq, 1), -jnp.inf, jnp.float32),
                 jnp.zeros((Tq, 1), jnp.float32),
                 jnp.zeros((Tq, H), jnp.float32))
        # Interior KV tiles (strictly below the diagonal): no mask needed,
        # dynamic trip count qi => causal FLOPs are actually skipped.
        carry = jax.lax.fori_loop(
            0, qi,
            lambda t, c: kv_step(pl.multiple_of(t * Tq, Tq), c, masked=False),
            carry)
        # Diagonal KV tile: apply the causal mask here only.
        m, l, acc = kv_step(pl.multiple_of(q_start, Tq), carry, masked=True)
        # TODO(synk): attention dropout omitted (dropout=0.0 / eval mode)

        o_h = acc * pl.reciprocal(l, approx=True)                    # (Tq, H)
        ocat_ref[:, lo:hi] = o_h.astype(ocat_ref.dtype)

    # Single D-deep output projection (saturates the 256-deep MXU on v6e/v7x)
    # + bias.  TODO(synk): residual/output dropout omitted (eval mode).
    out = jnp.dot(ocat_ref[...], wp_ref[...],
                  preferred_element_type=jnp.float32)
    o_ref[...] = (out + bp_ref[...]).astype(o_ref.dtype)


# ---------------------------------------------------------------------------
# Wrapper
# ---------------------------------------------------------------------------
def multi_head_attention(x, wq, wk, wv, w_proj, b_proj, *, block_q=128):
    """x: (B, C, D); wq/wk/wv: (nh, D, H); w_proj: (D, D) torch layout
    (out_features, in_features); b_proj: (D,).  Returns (B, C, D) in x.dtype."""
    B, C, D = x.shape
    nh, _, H = wq.shape
    assert nh * H == D

    # --- tiling / padding --------------------------------------------------
    # Small contexts use a single tile; long contexts are padded up to a
    # multiple of block_q (causality masks padded key cols for real rows, and
    # padded query rows are sliced off at the end) — no giant (C, C) tiles.
    if C <= block_q:
        block_q = C
        Cp = C
    else:
        Cp = pl.cdiv(C, block_q) * block_q
    n_q = Cp // block_q

    compute_dtype = jnp.bfloat16
    scale = 1.0 / math.sqrt(H)

    def widen(w):  # (nh, D, H) -> (D, nh*H); wide[:, h*H:(h+1)*H] == w[h]
        return jnp.transpose(w, (1, 0, 2)).reshape(D, nh * H)

    # Fold 1/sqrt(H) into Wq; stack QKV; cast weights to bf16 once (wrapper).
    wqkv = jnp.stack([widen(wq) * scale, widen(wk), widen(wv)]).astype(compute_dtype)
    wp = w_proj.T.astype(compute_dtype)            # torch: cat @ W.T + b
    bp = b_proj.reshape(1, D).astype(jnp.float32)

    x_c = x.astype(compute_dtype)                  # halves x DMA traffic
    if Cp != C:
        x_c = jnp.pad(x_c, ((0, 0), (0, Cp - C), (0, 0)))

    # --- per-generation VMEM budget (v5e/v6e: 128 MiB, v7x: 64 MiB) ---------
    try:
        vmem_cap = pltpu.get_tpu_info().vmem_capacity_bytes
    except Exception:
        vmem_cap = 64 * 1024 * 1024                # conservative fallback
    vmem_limit = min(int(0.85 * vmem_cap), 96 * 1024 * 1024)

    row_spec = pl.BlockSpec((None, block_q, D), lambda b, i: (b, i, 0))

    # --- stage 1: fused QKV projection (once per token) ---------------------
    # NOTE: constant index_maps mean the stacked weights are fetched once; for
    # very large D on v7x consider pipeline_mode=pl.Buffered(1) on them.
    q, k, v = pl.pallas_call(
        _qkv_proj_kernel,
        out_shape=(
            jax.ShapeDtypeStruct((B, Cp, D), compute_dtype),
            jax.ShapeDtypeStruct((B, Cp, D), compute_dtype),
            jax.ShapeDtypeStruct((B, Cp, D), compute_dtype),
        ),
        grid_spec=pltpu.PrefetchScalarGridSpec(
            num_scalar_prefetch=0,
            grid=(B, n_q),
            in_specs=[
                row_spec,                                          # x rows
                pl.BlockSpec((3, D, D), lambda b, i: (0, 0, 0)),   # Wq|Wk|Wv
            ],
            out_specs=(row_spec, row_spec, row_spec),
        ),
        compiler_params=pltpu.CompilerParams(
            dimension_semantics=("parallel", "parallel"),
            vmem_limit_bytes=vmem_limit,
        ),
    )(x_c, wqkv)

    # --- stage 2: causal flash attention + fused output projection ----------
    kernel = functools.partial(_attn_kernel, num_heads=nh)
    out = pl.pallas_call(
        kernel,
        out_shape=jax.ShapeDtypeStruct((B, Cp, D), x.dtype),
        grid_spec=pltpu.PrefetchScalarGridSpec(
            num_scalar_prefetch=0,
            grid=(B, n_q),
            in_specs=[
                pl.BlockSpec((None, block_q, D), lambda b, qi: (b, qi, 0)),  # Q tile
                pl.BlockSpec((None, Cp, D), lambda b, qi: (b, 0, 0)),        # K (constant over qi -> fetched once per batch)
                pl.BlockSpec((None, Cp, D), lambda b, qi: (b, 0, 0)),        # V
                pl.BlockSpec((D, D), lambda b, qi: (0, 0)),                  # W_proj.T
                pl.BlockSpec((1, D), lambda b, qi: (0, 0)),                  # bias
            ],
            out_specs=pl.BlockSpec((None, block_q, D), lambda b, qi: (b, qi, 0)),
            scratch_shapes=[pltpu.VMEM((block_q, D), compute_dtype)],        # per-head "concat"
        ),
        compiler_params=pltpu.CompilerParams(
            dimension_semantics=("parallel", "parallel"),
            vmem_limit_bytes=vmem_limit,
        ),
    )(q, k, v, wp, bp)

    if Cp != C:
        out = out[:, :C, :]
    return out


# ---------------------------------------------------------------------------
# Pure-JAX reference (mirrors the PyTorch module in eval mode)
# ---------------------------------------------------------------------------
def _reference(x, wq, wk, wv, w_proj, b_proj):
    nh, D, H = wq.shape
    C = x.shape[1]
    causal = jnp.tril(jnp.ones((C, C), dtype=bool))
    outs = []
    for h in range(nh):
        q = x @ wq[h]
        k = x @ wk[h]
        v = x @ wv[h]
        att = (q @ jnp.swapaxes(k, -2, -1)) / math.sqrt(H)
        att = jnp.where(causal[None], att, -jnp.inf)
        att = jax.nn.softmax(att, axis=-1)
        outs.append(att @ v)
    cat = jnp.concatenate(outs, axis=-1)
    return cat @ w_proj.T + b_proj


if __name__ == "__main__":
    # small shapes consistent with the module: B=2, C=8 (context), D=32, 4 heads
    B, C, D, num_heads = 2, 8, 32, 4
    H = D // num_heads

    key = jax.random.PRNGKey(0)
    kx, kq, kk, kv, kpw, kpb = jax.random.split(key, 6)

    x = jax.random.normal(kx, (B, C, D), dtype=jnp.float32)

    def init(k, shape, fan_in):
        bound = 1.0 / math.sqrt(fan_in)
        return jax.random.uniform(k, shape, jnp.float32, -bound, bound)

    wq = init(kq, (num_heads, D, H), D)
    wk = init(kk, (num_heads, D, H), D)
    wv = init(kv, (num_heads, D, H), D)
    w_proj = init(kpw, (D, D), D)          # torch layout: (out_features, in_features)
    b_proj = init(kpb, (D,), D)

    out = multi_head_attention(x, wq, wk, wv, w_proj, b_proj)
    out = jax.block_until_ready(out)

    ref = _reference(x, wq, wk, wv, w_proj, b_proj)
    assert out.shape == (B, C, D)
    max_err = float(jnp.max(jnp.abs(out - ref)))
    # bf16 MXU operands with f32 accumulation -> loosened tolerance vs f32 ref
    assert jnp.allclose(out, ref, atol=3e-2, rtol=3e-2), f"mismatch vs reference (max_err={max_err})"

    print("KERNEL_OK")
</pallas_src>

<mosaic_0001>
module attributes {stable_mosaic.version = 11 : i64} {
  func.func @_qkv_proj_kernel(%arg0: i32, %arg1: i32, %arg2: memref<1x8x32xbf16, #tpu.memory_space<vmem>>, %arg3: memref<3x32x32xbf16, #tpu.memory_space<vmem>>, %arg4: memref<1x8x32xbf16, #tpu.memory_space<vmem>>, %arg5: memref<1x8x32xbf16, #tpu.memory_space<vmem>>, %arg6: memref<1x8x32xbf16, #tpu.memory_space<vmem>>) attributes {dimension_semantics = [#tpu.dimension_semantics<parallel>, #tpu.dimension_semantics<parallel>], iteration_bounds = array<i64: 2, 1>, scalar_prefetch = 0 : i64, scratch_operands = 0 : i64, tpu.core_type = #tpu.core_type<tc>, window_params = [{transform_indices = @transform_0, window_bounds = array<i64: 1, 8, 32>}, {pipeline_mode = #tpu.pipeline_mode<synchronous>, transform_indices = @transform_1, window_bounds = array<i64: 3, 32, 32>}, {transform_indices = @transform_2, window_bounds = array<i64: 1, 8, 32>}, {transform_indices = @transform_3, window_bounds = array<i64: 1, 8, 32>}, {transform_indices = @transform_4, window_bounds = array<i64: 1, 8, 32>}]} {
    %c0 = arith.constant 0 : index
    %c0_0 = arith.constant 0 : index
    %c0_1 = arith.constant 0 : index
    %0 = vector.load %arg2[%c0, %c0_0, %c0_1] : memref<1x8x32xbf16, #tpu.memory_space<vmem>>, vector<1x8x32xbf16>
    %1 = vector.shape_cast %0 : vector<1x8x32xbf16> to vector<8x32xbf16>
    %c0_2 = arith.constant 0 : index
    %c0_3 = arith.constant 0 : index
    %c0_4 = arith.constant 0 : index
    %2 = vector.load %arg3[%c0_2, %c0_3, %c0_4] : memref<3x32x32xbf16, #tpu.memory_space<vmem>>, vector<1x32x32xbf16>
    %3 = vector.shape_cast %2 : vector<1x32x32xbf16> to vector<32x32xbf16>
    %cst = arith.constant dense<0.000000e+00> : vector<8x32xf32>
    %4 = tpu.matmul %1, %3, %cst {dimension_numbers = #tpu.dot_dimension_numbers<[1], [0], [0], [1], [0, 0, 1, 1], [], []>} : vector<8x32xbf16>, vector<32x32xbf16>, vector<8x32xf32> -> vector<8x32xf32>
    %5 = arith.truncf %4 : vector<8x32xf32> to vector<8x32xbf16>
    %c0_5 = arith.constant 0 : index
    %c0_6 = arith.constant 0 : index
    %c0_7 = arith.constant 0 : index
    %6 = vector.load %arg4[%c0_5, %c0_6, %c0_7] : memref<1x8x32xbf16, #tpu.memory_space<vmem>>, vector<1x8x32xbf16>
    %7 = vector.shape_cast %6 : vector<1x8x32xbf16> to vector<8x32xbf16>
    %8 = vector.shape_cast %5 : vector<8x32xbf16> to vector<1x8x32xbf16>
    tpu.vector_store %arg4[%c0_5, %c0_6, %c0_7], %8 {strides = array<i32>} : memref<1x8x32xbf16, #tpu.memory_space<vmem>>, vector<1x8x32xbf16>,
    %c1 = arith.constant 1 : index
    %c0_8 = arith.constant 0 : index
    %c0_9 = arith.constant 0 : index
    %9 = vector.load %arg3[%c1, %c0_8, %c0_9] : memref<3x32x32xbf16, #tpu.memory_space<vmem>>, vector<1x32x32xbf16>
    %10 = vector.shape_cast %9 : vector<1x32x32xbf16> to vector<32x32xbf16>
    %cst_10 = arith.constant dense<0.000000e+00> : vector<8x32xf32>
    %11 = tpu.matmul %1, %10, %cst_10 {dimension_numbers = #tpu.dot_dimension_numbers<[1], [0], [0], [1], [0, 0, 1, 1], [], []>} : vector<8x32xbf16>, vector<32x32xbf16>, vector<8x32xf32> -> vector<8x32xf32>
    %12 = arith.truncf %11 : vector<8x32xf32> to vector<8x32xbf16>
    %c0_11 = arith.constant 0 : index
    %c0_12 = arith.constant 0 : index
    %c0_13 = arith.constant 0 : index
    %13 = vector.load %arg5[%c0_11, %c0_12, %c0_13] : memref<1x8x32xbf16, #tpu.memory_space<vmem>>, vector<1x8x32xbf16>
    %14 = vector.shape_cast %13 : vector<1x8x32xbf16> to vector<8x32xbf16>
    %15 = vector.shape_cast %12 : vector<8x32xbf16> to vector<1x8x32xbf16>
    tpu.vector_store %arg5[%c0_11, %c0_12, %c0_13], %15 {strides = array<i32>} : memref<1x8x32xbf16, #tpu.memory_space<vmem>>, vector<1x8x32xbf16>,
    %c2 = arith.constant 2 : index
    %c0_14 = arith.constant 0 : index
    %c0_15 = arith.constant 0 : index
    %16 = vector.load %arg3[%c2, %c0_14, %c0_15] : memref<3x32x32xbf16, #tpu.memory_space<vmem>>, vector<1x32x32xbf16>
    %17 = vector.shape_cast %16 : vector<1x32x32xbf16> to vector<32x32xbf16>
    %cst_16 = arith.constant dense<0.000000e+00> : vector<8x32xf32>
    %18 = tpu.matmul %1, %17, %cst_16 {dimension_numbers = #tpu.dot_dimension_numbers<[1], [0], [0], [1], [0, 0, 1, 1], [], []>} : vector<8x32xbf16>, vector<32x32xbf16>, vector<8x32xf32> -> vector<8x32xf32>
    %19 = arith.truncf %18 : vector<8x32xf32> to vector<8x32xbf16>
    %c0_17 = arith.constant 0 : index
    %c0_18 = arith.constant 0 : index
    %c0_19 = arith.constant 0 : index
    %20 = vector.load %arg6[%c0_17, %c0_18, %c0_19] : memref<1x8x32xbf16, #tpu.memory_space<vmem>>, vector<1x8x32xbf16>
    %21 = vector.shape_cast %20 : vector<1x8x32xbf16> to vector<8x32xbf16>
    %22 = vector.shape_cast %19 : vector<8x32xbf16> to vector<1x8x32xbf16>
    tpu.vector_store %arg6[%c0_17, %c0_18, %c0_19], %22 {strides = array<i32>} : memref<1x8x32xbf16, #tpu.memory_space<vmem>>, vector<1x8x32xbf16>,
    return
  }
  func.func @transform_0(%arg0: i32, %arg1: i32) -> (i32, i32, i32) {
    %c0_i32 = arith.constant 0 : i32
    %c0_i32_0 = arith.constant 0 : i32
    return %arg0, %arg1, %c0_i32 : i32, i32, i32
  }
  func.func @transform_1(%arg0: i32, %arg1: i32) -> (i32, i32, i32) {
    %c0_i32 = arith.constant 0 : i32
    %c0_i32_0 = arith.constant 0 : i32
    %c0_i32_1 = arith.constant 0 : i32
    %c0_i32_2 = arith.constant 0 : i32
    return %c0_i32, %c0_i32_0, %c0_i32_1 : i32, i32, i32
  }
  func.func @transform_2(%arg0: i32, %arg1: i32) -> (i32, i32, i32) {
    %c0_i32 = arith.constant 0 : i32
    %c0_i32_0 = arith.constant 0 : i32
    return %arg0, %arg1, %c0_i32 : i32, i32, i32
  }
  func.func @transform_3(%arg0: i32, %arg1: i32) -> (i32, i32, i32) {
    %c0_i32 = arith.constant 0 : i32
    %c0_i32_0 = arith.constant 0 : i32
    return %arg0, %arg1, %c0_i32 : i32, i32, i32
  }
  func.func @transform_4(%arg0: i32, %arg1: i32) -> (i32, i32, i32) {
    %c0_i32 = arith.constant 0 : i32
    %c0_i32_0 = arith.constant 0 : i32
    return %arg0, %arg1, %c0_i32 : i32, i32, i32
  }
}

</mosaic_0001>

<llo_original>
// kernel: tpu_custom_call.1
$region0: #{tpu_custom_call.1}
  #allocation0 [shape = 'u32[]', space=smem, size = 0x4, offset = 0x4, fixed_abs, tag = 'smem constant byte address 0x4 - core index']
  #allocation1 [shape = 'u32[72,128]{1,0:T(1,128)}', space=vmem, size = 0x9000, scoped, tag = 'internal scratch']
  %s0 = inlined_call_operand.hbm [shape: bf16[2,8,32], index: 0, kind: input, shape index: {}]
  %s1 = inlined_call_operand.hbm [shape: bf16[3,32,32], index: 1, kind: input, shape index: {}]
  %s2 = inlined_call_operand.hbm [shape: bf16[2,8,32], index: 2, kind: output, shape index: {0}]
  %s3 = inlined_call_operand.hbm [shape: bf16[2,8,32], index: 3, kind: output, shape index: {1}]
  %s4 = inlined_call_operand.hbm [shape: bf16[2,8,32], index: 4, kind: output, shape index: {2}]
  %5 = xla_tuple %s2, %s3, %s4
  %s6 = sld [smem:[#allocation0]]
  $region65: #{tpu_custom_call.1} parent=0
    _
  %s8 = ssub.s32 1, %s6
  %s9 = scalar_select 0, %s8, %s6
  $region1: #{tpu_custom_call.1} parent=0
    #allocation2 [shape = 'u8[4096]{0}', space=vmem, size = 0x1000, scoped, tag = 'input window, operand 0']
    #allocation3 [shape = 's32[2]{0}', space=sflag, size = 0x8, scoped, tag = 'scoped memory for tpu_custom_call.1']
    #allocation4 [shape = 's32[2]{0}', space=sflag, size = 0x8, scoped, tag = 'scoped memory for tpu_custom_call.1']
    #allocation5 [shape = 'u8[24576]{0}', space=vmem, size = 0x6000, scoped, tag = 'input window, operand 1, single buffered']
    #allocation6 [shape = 's32[1]{0}', space=sflag, size = 0x4, scoped, tag = 'scoped memory for tpu_custom_call.1']
    #allocation7 [shape = 'u8[4096]{0}', space=vmem, size = 0x1000, scoped, tag = 'output window, operand 0']
    #allocation8 [shape = 'u8[4096]{0}', space=vmem, size = 0x1000, scoped, tag = 'output window, operand 1']
    #allocation9 [shape = 's32[2]{0}', space=sflag, size = 0x8, scoped, tag = 'scoped memory for tpu_custom_call.1']
    #allocation10 [shape = 'u8[4096]{0}', space=vmem, size = 0x1000, scoped, tag = 'output window, operand 2']
    %10 = vsyncpa [#allocation3], 0
    %s11 = scalar_lea.sflag [#allocation3], 1
    %12 = vsyncpa %s11, 0
    %13 = vsyncpa [#allocation6], 0
    %14 = vsyncpa [#allocation4], 0
    %s15 = scalar_lea.sflag [#allocation4], 1
    %16 = vsyncpa %s15, 0
    %17 = vsyncpa [#allocation9], 0
    %s18 = scalar_lea.sflag [#allocation9], 1
    %19 = vsyncpa %s18, 0
    loop: start=0, step=1, limit=4
    $region2: #{tpu_custom_call.1} parent=1 // loop_pre_header
      _
    $region3: #{tpu_custom_call.1} parent=1 // loop_header
      %s21 = sphi 0, %s25
      %p22 = scmp.ge.s32.totalorder %s21, 4
      %s28 = sphi 0, %s40
      %s29 = sphi 0, %s36
      %s30 = sphi 0, %s28
      %s31 = sphi 0, %s29
      %s32 = sphi 0, %s30
      %s33 = sphi 0, %s31
      %s45 = sphi 0, %s47
      %s48 = sphi 0, %s45
      %s49 = sphi 0, %s48
      %s65 = sphi 0, %s49
      %s69 = sphi 0, %s69
      %s71 = sphi 0, %s69
      %s72 = sphi 0, %s71
      %s86 = sphi 0, %s72
      %s94 = sphi 0, %s96
      %s97 = sphi 0, %s94
      %s98 = sphi 0, %s97
      %s114 = sphi 0, %s98
      %s122 = sphi 0, %s124
      %s125 = sphi 0, %s122
      %s126 = sphi 0, %s125
      %s142 = sphi 0, %s126
      %s150 = sphi 0, %s152
      %s153 = sphi 0, %s150
      %s154 = sphi 0, %s153
      %s170 = sphi 0, %s154
    $region4: #{tpu_custom_call.1} parent=1 // loop_header_branch
      %24 = sbr.rel (%p22) target = $region8
    $region5: #{tpu_custom_call.1} parent=1 // loop_body
      %s26 = ssub.s32 %s21, 1
      %s27 = ssub.s32 %s21, 2
      %s34 = sadd.s32 1, %s29
      %p35 = scmp.ge.s32.totalorder %s34, 1
      %s36 = scalar_select %p35, 0, %s34
      %s37 = sadd.s32 1, %s28
      %s38 = scalar_select %p35, %s37, %s28
      %p39 = scmp.ge.s32.totalorder %s38, 2
      %s40 = scalar_select %p39, 0, %s38
      %s41 = ssub.s32 %s28, %s40
      %s42 = ssub.s32 %s29, %s36
      %s43 = sor.u32 %s41, %s42
      %p44 = scmp.eq.s32.totalorder %s43, 0
      %s46 = sadd.s32 %s45, 1
      %s47 = scalar_select %p44, %s45, %s46
      %p50 = pneg %p44
      %p51 = scmp.eq.s32.totalorder %s21, 1
      %p52 = por %p50, %p51
      %p53 = scmp.ne.s32.totalorder %s45, %s48
      %p54 = scmp.eq.s32.totalorder %s21, 0
      %p55 = por %p53, %p54
      %p56 = scmp.ne.s32.totalorder %s45, %s48
      %p57 = scmp.eq.s32.totalorder %s26, 1
      %p58 = por %p56, %p57
      %p59 = scmp.ne.s32.totalorder %s48, %s49
      %p60 = scmp.eq.s32.totalorder %s26, 0
      %p61 = por %p59, %p60
      %p62 = scmp.ne.s32.totalorder %s48, %s49
      %p63 = scmp.eq.s32.totalorder %s27, 1
      %p64 = por %p62, %p63
      %p66 = scmp.ne.s32.totalorder %s49, %s65
      %p67 = scmp.eq.s32.totalorder %s27, 0
      %p68 = por %p66, %p67
      %s70 = sadd.s32 %s69, 1
      %p73 = scmp.eq.s32.totalorder %s21, 1
      %p74 = scmp.ne.s32.totalorder %s69, %s71
      %p75 = scmp.eq.s32.totalorder %s21, 0
      %p76 = por %p74, %p75
      %p77 = scmp.ne.s32.totalorder %s69, %s71
      %p78 = scmp.eq.s32.totalorder %s26, 1
      %p79 = por %p77, %p78
      %p80 = scmp.ne.s32.totalorder %s71, %s72
      %p81 = scmp.eq.s32.totalorder %s26, 0
      %p82 = por %p80, %p81
      %p83 = scmp.ne.s32.totalorder %s71, %s72
      %p84 = scmp.eq.s32.totalorder %s27, 1
      %p85 = por %p83, %p84
      %p87 = scmp.ne.s32.totalorder %s72, %s86
      %p88 = scmp.eq.s32.totalorder %s27, 0
      %p89 = por %p87, %p88
      %s90 = ssub.s32 %s28, %s40
      %s91 = ssub.s32 %s29, %s36
      %s92 = sor.u32 %s90, %s91
      %p93 = scmp.eq.s32.totalorder %s92, 0
      %s95 = sadd.s32 %s94, 1
      %s96 = scalar_select %p93, %s94, %s95
      %p99 = pneg %p93
      %p100 = scmp.eq.s32.totalorder %s21, 1
      %p101 = por %p99, %p100
      %p102 = scmp.ne.s32.totalorder %s94, %s97
      %p103 = scmp.eq.s32.totalorder %s21, 0
      %p104 = por %p102, %p103
      %p105 = scmp.ne.s32.totalorder %s94, %s97
      %p106 = scmp.eq.s32.totalorder %s26, 1
      %p107 = por %p105, %p106
      %p108 = scmp.ne.s32.totalorder %s97, %s98
      %p109 = scmp.eq.s32.totalorder %s26, 0
      %p110 = por %p108, %p109
      %p111 = scmp.ne.s32.totalorder %s97, %s98
      %p112 = scmp.eq.s32.totalorder %s27, 1
      %p113 = por %p111, %p112
      %p115 = scmp.ne.s32.totalorder %s98, %s114
      %p116 = scmp.eq.s32.totalorder %s27, 0
      %p117 = por %p115, %p116
      %s118 = ssub.s32 %s28, %s40
      %s119 = ssub.s32 %s29, %s36
      %s120 = sor.u32 %s118, %s119
      %p121 = scmp.eq.s32.totalorder %s120, 0
      %s123 = sadd.s32 %s122, 1
      %s124 = scalar_select %p121, %s122, %s123
      %p127 = pneg %p121
      %p128 = scmp.eq.s32.totalorder %s21, 1
      %p129 = por %p127, %p128
      %p130 = scmp.ne.s32.totalorder %s122, %s125
      %p131 = scmp.eq.s32.totalorder %s21, 0
      %p132 = por %p130, %p131
      %p133 = scmp.ne.s32.totalorder %s122, %s125
      %p134 = scmp.eq.s32.totalorder %s26, 1
      %p135 = por %p133, %p134
      %p136 = scmp.ne.s32.totalorder %s125, %s126
      %p137 = scmp.eq.s32.totalorder %s26, 0
      %p138 = por %p136, %p137
      %p139 = scmp.ne.s32.totalorder %s125, %s126
      %p140 = scmp.eq.s32.totalorder %s27, 1
      %p141 = por %p139, %p140
      %p143 = scmp.ne.s32.totalorder %s126, %s142
      %p144 = scmp.eq.s32.totalorder %s27, 0
      %p145 = por %p143, %p144
      %s146 = ssub.s32 %s28, %s40
      %s147 = ssub.s32 %s29, %s36
      %s148 = sor.u32 %s146, %s147
      %p149 = scmp.eq.s32.totalorder %s148, 0
      %s151 = sadd.s32 %s150, 1
      %s152 = scalar_select %p149, %s150, %s151
      %p155 = pneg %p149
      %p156 = scmp.eq.s32.totalorder %s21, 1
      %p157 = por %p155, %p156
      %p158 = scmp.ne.s32.totalorder %s150, %s153
      %p159 = scmp.eq.s32.totalorder %s21, 0
      %p160 = por %p158, %p159
      %p161 = scmp.ne.s32.totalorder %s150, %s153
      %p162 = scmp.eq.s32.totalorder %s26, 1
      %p163 = por %p161, %p162
      %p164 = scmp.ne.s32.totalorder %s153, %s154
      %p165 = scmp.eq.s32.totalorder %s26, 0
      %p166 = por %p164, %p165
      %p167 = scmp.ne.s32.totalorder %s153, %s154
      %p168 = scmp.eq.s32.totalorder %s27, 1
      %p169 = por %p167, %p168
      %p171 = scmp.ne.s32.totalorder %s154, %s170
      %p172 = scmp.eq.s32.totalorder %s27, 0
      %p173 = por %p171, %p172
      %p174 = scmp.le.s32.totalorder 1, %s21
      %p175 = scmp.lt.s32.totalorder %s21, 3
      %p176 = pnand %p174, %p175
      %p177 = pneg %p176
      // Predicated region
      $region9: #{tpu_custom_call.1} parent=5 // pred_check
        _
      $region10: #{tpu_custom_call.1} parent=5 // pred_check_branch
        %179 = sbr.rel (%p176) target = $region12
      $region11: #{tpu_custom_call.1} parent=5 // pred_region
        %s180 = ssub.s32 %s21, 1
        // Predicated region
        $region13: #{tpu_custom_call.1} parent=11 // pred_check
          %p181 = pneg %p82
        $region14: #{tpu_custom_call.1} parent=11 // pred_check_branch
          %183 = sbr.rel (%p181) target = $region16
        $region15: #{tpu_custom_call.1} parent=11 // pred_region
          %185 = vsyncadd [#allocation6], 0
          %s186 = sshll.u32 %s1, 4
          %s187 = int_to_ptr.hbm [resolvable:$true] %s186
          %s188 = sshll.u32 [#allocation5], 4
          %s189 = int_to_ptr.vmem [resolvable:$true] %s188
          %194 = dma.hbm_to_vmem [thread:$0]  %s187, 768, %s189, [#allocation6], 64, 64, 4
        $region16: #{tpu_custom_call.1} parent=11 // pred_fallthru
          _
      $region12: #{tpu_custom_call.1} parent=5 // pred_fallthru
        _
      %p195 = scmp.lt.s32.totalorder %s21, 2
      // Predicated region
      $region17: #{tpu_custom_call.1} parent=5 // pred_check
        %p196 = pneg %p195
      $region18: #{tpu_custom_call.1} parent=5 // pred_check_branch
        %198 = sbr.rel (%p196) target = $region20
      $region19: #{tpu_custom_call.1} parent=5 // pred_region
        // Predicated region
        $region21: #{tpu_custom_call.1} parent=19 // pred_check
          %p199 = pneg %p55
        $region22: #{tpu_custom_call.1} parent=19 // pred_check_branch
          %201 = sbr.rel (%p199) target = $region24
        $region23: #{tpu_custom_call.1} parent=19 // pred_region
          %s202 = sand.u32 %s45, 1
          %s203 = scalar_lea.sflag [#allocation3], %s202
          %s204 = sand.u32 %s45, 1
          %s205 = smul.addr %s204, 4
          %s206 = scalar_lea.vmem [#allocation2], %s205
          %208 = vsyncadd %s203, 0
          %s209 = sadd.s32 %s29, %s28
          %s210 = smul.addr %s209, 4
          %s211 = scalar_lea.hbm %s0, %s210
          %s213 = sshll.u32 %s211, 4
          %s214 = int_to_ptr.hbm [resolvable:$true] %s213
          %s215 = sshll.u32 %s206, 4
          %s216 = int_to_ptr.vmem [resolvable:$true] %s215
          %218 = dma.hbm_to_vmem [thread:$0]  %s214, 64, %s216, %s203
        $region24: #{tpu_custom_call.1} parent=19 // pred_fallthru
          _
      $region20: #{tpu_custom_call.1} parent=5 // pred_fallthru
        _
      %p219 = scmp.le.s32.totalorder 1, %s21
      %p220 = scmp.lt.s32.totalorder %s21, 3
      %p221 = pnand %p219, %p220
      %p222 = pneg %p221
      // Predicated region
      $region25: #{tpu_custom_call.1} parent=5 // pred_check
        _
      $region26: #{tpu_custom_call.1} parent=5 // pred_check_branch
        %224 = sbr.rel (%p221) target = $region28
      $region27: #{tpu_custom_call.1} parent=5 // pred_region
        %s225 = ssub.s32 %s21, 1
        %s226 = sand.u32 %s48, 1
        %s227 = scalar_lea.sflag [#allocation3], %s226
        %s228 = sand.u32 %s48, 1
        %s229 = smul.addr %s228, 4
        %s230 = scalar_lea.vmem [#allocation2], %s229
        // Predicated region
        $region29: #{tpu_custom_call.1} parent=27 // pred_check
          %p231 = pneg %p61
        $region30: #{tpu_custom_call.1} parent=27 // pred_check_branch
          %233 = sbr.rel (%p231) target = $region32
        $region31: #{tpu_custom_call.1} parent=27 // pred_region
          %235 = dma.done %s227, 64
        $region32: #{tpu_custom_call.1} parent=27 // pred_fallthru
          _
        // Predicated region
        $region33: #{tpu_custom_call.1} parent=27 // pred_check
          %p236 = pneg %p82
        $region34: #{tpu_custom_call.1} parent=27 // pred_check_branch
          %238 = sbr.rel (%p236) target = $region36
        $region35: #{tpu_custom_call.1} parent=27 // pred_region
          %240 = dma.done [#allocation6], 768
        $region36: #{tpu_custom_call.1} parent=27 // pred_fallthru
          _
        %s241 = sand.u32 %s48, 1
        %s242 = scalar_lea.sflag [#allocation3], %s241
        %s243 = sand.u32 %s48, 1
        %s244 = smul.addr %s243, 4
        %s245 = scalar_lea.vmem [#allocation2], %s244
        %p246 = pneg %p61
        %p247 = pneg %p58
        %p248 = pneg %p82
        %p249 = pneg %p79
        %p250 = pneg %p110
        %p251 = pneg %p107
        %s252 = sand.u32 %s97, 1
        %s253 = scalar_lea.sflag [#allocation4], %s252
        %s254 = sand.u32 %s97, 1
        %s255 = smul.addr %s254, 4
        %s256 = scalar_lea.vmem [#allocation7], %s255
        %p257 = pneg %p138
        %p258 = pneg %p135
        %s259 = sand.u32 %s26, 1
        %s260 = scalar_lea.sflag [#allocation9], %s259
        %s261 = sand.u32 %s125, 1
        %s262 = smul.addr %s261, 4
        %s263 = scalar_lea.vmem [#allocation8], %s262
        %p264 = pneg %p166
        %p265 = pneg %p163
        %s266 = sand.u32 %s26, 1
        %s267 = scalar_lea.sflag [#allocation9], %s266
        %s268 = sand.u32 %s153, 1
        %s269 = smul.addr %s268, 4
        %s270 = scalar_lea.vmem [#allocation10], %s269
        %v272 = vld [vmem:[%s230] sm:$0xf]
        %v273 = vld [vmem:[#allocation5] sm:$0xf]
        %v274 = vld [vmem:[#allocation5 + $0x4] sm:$0xf]
        %v275 = vld [vmem:[#allocation5 + $0x8] sm:$0xf]
        %v276 = vld [vmem:[#allocation5 + $0xc] sm:$0xf]
        %v281 = vunpack.c.l.b16 %v273
        %v282 = vunpack.c.l.b16 %v274
        %v283 = vunpack.c.l.b16 %v275
        %v284 = vunpack.c.l.b16 %v276
        %v285 = vpack.c.b16 %v282, %v281
        %v286 = vpack.c.b16 %v284, %v283
        %vm289 = vcmask 261120
        %v291 = vsel %vm289, %v272, 0
        %293 = vmatpush.bf16.msra.mxu0 0
        %294 = vmatpush.bf16.msra.mxu0 0
        %295 = vmatpush.bf16.msra.mxu0 0
        %296 = vmatpush.bf16.msra.mxu0 0
        %297 = vmatpush.bf16.msra.mxu0 0
        %298 = vmatpush.bf16.msra.mxu0 0
        %299 = vmatpush.bf16.msra.mxu0 %v286
        %300 = vmatpush.bf16.msra.mxu0 %v285
        %301 = vmatmul.bf16.gmra.mxu0 %v291
        %v302 = vpop.f32.mrf.mxu0
        %v303 = vadd.f32 0.0, %v302
        %v304 = vpop.f32.mrf.mxu0
        %305 = vdwg.mxu0
        %v306 = vpack.c.bf16 %v303, %v303
        %vm307 = vcmask 257024
        %308 = vst.msk [vmem:[%s256] sm:$0xf] %vm307, %v306
        %s309 = scalar_lea.vmem [#allocation5], 16
        %v310 = vld [vmem:[%s309] sm:$0xf]
        %v311 = vld [vmem:[%s309 + $0x4] sm:$0xf]
        %v312 = vld [vmem:[%s309 + $0x8] sm:$0xf]
        %v313 = vld [vmem:[%s309 + $0xc] sm:$0xf]
        %v318 = vunpack.c.l.b16 %v310
        %v319 = vunpack.c.l.b16 %v311
        %v320 = vunpack.c.l.b16 %v312
        %v321 = vunpack.c.l.b16 %v313
        %v322 = vpack.c.b16 %v319, %v318
        %v323 = vpack.c.b16 %v321, %v320
        %326 = vmatpush.bf16.msra.mxu0 0
        %327 = vmatpush.bf16.msra.mxu0 0
        %328 = vmatpush.bf16.msra.mxu0 0
        %329 = vmatpush.bf16.msra.mxu0 0
        %330 = vmatpush.bf16.msra.mxu0 0
        %331 = vmatpush.bf16.msra.mxu0 0
        %332 = vmatpush.bf16.msra.mxu0 %v323
        %333 = vmatpush.bf16.msra.mxu0 %v322
        %334 = vmatmul.bf16.gmra.mxu0 %v291
        %v335 = vpop.f32.mrf.mxu0
        %v336 = vadd.f32 0.0, %v335
        %v337 = vpop.f32.mrf.mxu0
        %338 = vdwg.mxu0
        %v339 = vpack.c.bf16 %v336, %v336
        %340 = vst.msk [vmem:[%s263] sm:$0xf] %vm307, %v339
        %s341 = scalar_lea.vmem [#allocation5], 32
        %v342 = vld [vmem:[%s341] sm:$0xf]
        %v343 = vld [vmem:[%s341 + $0x4] sm:$0xf]
        %v344 = vld [vmem:[%s341 + $0x8] sm:$0xf]
        %v345 = vld [vmem:[%s341 + $0xc] sm:$0xf]
        %v350 = vunpack.c.l.b16 %v342
        %v351 = vunpack.c.l.b16 %v343
        %v352 = vunpack.c.l.b16 %v344
        %v353 = vunpack.c.l.b16 %v345
        %v354 = vpack.c.b16 %v351, %v350
        %v355 = vpack.c.b16 %v353, %v352
        %358 = vmatpush.bf16.msra.mxu0 0
        %359 = vmatpush.bf16.msra.mxu0 0
        %360 = vmatpush.bf16.msra.mxu0 0
        %361 = vmatpush.bf16.msra.mxu0 0
        %362 = vmatpush.bf16.msra.mxu0 0
        %363 = vmatpush.bf16.msra.mxu0 0
        %364 = vmatpush.bf16.msra.mxu0 %v355
        %365 = vmatpush.bf16.msra.mxu0 %v354
        %366 = vmatmul.bf16.gmra.mxu0 %v291
        %v367 = vpop.f32.mrf.mxu0
        %v368 = vadd.f32 0.0, %v367
        %v369 = vpop.f32.mrf.mxu0
        %370 = vdwg.mxu0
        %v371 = vpack.c.bf16 %v368, %v368
        %372 = vst.msk [vmem:[%s270] sm:$0xf] %vm307, %v371
        %s373 = sand.u32 %s97, 1
        %s374 = scalar_lea.sflag [#allocation4], %s373
        %s375 = sand.u32 %s97, 1
        %s376 = smul.addr %s375, 4
        %s377 = scalar_lea.vmem [#allocation7], %s376
        %s378 = sand.u32 %s26, 1
        %s379 = scalar_lea.sflag [#allocation9], %s378
        %s380 = sand.u32 %s125, 1
        %s381 = smul.addr %s380, 4
        %s382 = scalar_lea.vmem [#allocation8], %s381
        %s383 = sand.u32 %s26, 1
        %s384 = scalar_lea.sflag [#allocation9], %s383
        %s385 = sand.u32 %s153, 1
        %s386 = smul.addr %s385, 4
        %s387 = scalar_lea.vmem [#allocation10], %s386
        // Predicated region
        $region37: #{tpu_custom_call.1} parent=27 // pred_check
          %p388 = pneg %p107
        $region38: #{tpu_custom_call.1} parent=27 // pred_check_branch
          %390 = sbr.rel (%p388) target = $region40
        $region39: #{tpu_custom_call.1} parent=27 // pred_region
          %392 = vsyncadd %s374, 0
          %s393 = sadd.s32 %s31, %s30
          %s394 = smul.addr %s393, 4
          %s395 = scalar_lea.hbm %s2, %s394
          %s397 = sshll.u32 %s377, 4
          %s398 = int_to_ptr.vmem [resolvable:$true] %s397
          %s399 = sshll.u32 %s395, 4
          %s400 = int_to_ptr.hbm [resolvable:$true] %s399
          %402 = dma.vmem_to_hbm [thread:$0]  %s398, 64, %s400, %s374
        $region40: #{tpu_custom_call.1} parent=27 // pred_fallthru
          _
        // Predicated region
        $region41: #{tpu_custom_call.1} parent=27 // pred_check
          %p403 = pneg %p135
        $region42: #{tpu_custom_call.1} parent=27 // pred_check_branch
          %405 = sbr.rel (%p403) target = $region44
        $region43: #{tpu_custom_call.1} parent=27 // pred_region
          %407 = vsyncadd %s379, 0
          %s408 = sadd.s32 %s31, %s30
          %s409 = smul.addr %s408, 4
          %s410 = scalar_lea.hbm %s3, %s409
          %s412 = sshll.u32 %s382, 4
          %s413 = int_to_ptr.vmem [resolvable:$true] %s412
          %s414 = sshll.u32 %s410, 4
          %s415 = int_to_ptr.hbm [resolvable:$true] %s414
          %417 = dma.vmem_to_hbm [thread:$0]  %s413, 64, %s415, %s379
        $region44: #{tpu_custom_call.1} parent=27 // pred_fallthru
          _
        // Predicated region
        $region45: #{tpu_custom_call.1} parent=27 // pred_check
          %p418 = pneg %p163
        $region46: #{tpu_custom_call.1} parent=27 // pred_check_branch
          %420 = sbr.rel (%p418) target = $region48
        $region47: #{tpu_custom_call.1} parent=27 // pred_region
          %422 = vsyncadd %s384, 0
          %s423 = sadd.s32 %s31, %s30
          %s424 = smul.addr %s423, 4
          %s425 = scalar_lea.hbm %s4, %s424
          %s427 = sshll.u32 %s387, 4
          %s428 = int_to_ptr.vmem [resolvable:$true] %s427
          %s429 = sshll.u32 %s425, 4
          %s430 = int_to_ptr.hbm [resolvable:$true] %s429
          %432 = dma.vmem_to_hbm [thread:$0]  %s428, 64, %s430, %s384
        $region48: #{tpu_custom_call.1} parent=27 // pred_fallthru
          _
      $region28: #{tpu_custom_call.1} parent=5 // pred_fallthru
        _
      %p433 = scmp.le.s32.totalorder 2, %s21
      // Predicated region
      $region49: #{tpu_custom_call.1} parent=5 // pred_check
        %p434 = pneg %p433
      $region50: #{tpu_custom_call.1} parent=5 // pred_check_branch
        %436 = sbr.rel (%p434) target = $region52
      $region51: #{tpu_custom_call.1} parent=5 // pred_region
        %s437 = ssub.s32 %s21, 2
        // Predicated region
        $region53: #{tpu_custom_call.1} parent=51 // pred_check
          %p438 = pneg %p113
        $region54: #{tpu_custom_call.1} parent=51 // pred_check_branch
          %440 = sbr.rel (%p438) target = $region56
        $region55: #{tpu_custom_call.1} parent=51 // pred_region
          %s441 = sand.u32 %s98, 1
          %s442 = scalar_lea.sflag [#allocation4], %s441
          %s443 = sand.u32 %s98, 1
          %s444 = smul.addr %s443, 4
          %s445 = scalar_lea.vmem [#allocation7], %s444
          %447 = dma.done %s442, 64
        $region56: #{tpu_custom_call.1} parent=51 // pred_fallthru
          _
        // Predicated region
        $region57: #{tpu_custom_call.1} parent=51 // pred_check
          %p448 = pneg %p141
        $region58: #{tpu_custom_call.1} parent=51 // pred_check_branch
          %450 = sbr.rel (%p448) target = $region60
        $region59: #{tpu_custom_call.1} parent=51 // pred_region
          %s451 = sand.u32 %s27, 1
          %s452 = scalar_lea.sflag [#allocation9], %s451
          %s453 = sand.u32 %s126, 1
          %s454 = smul.addr %s453, 4
          %s455 = scalar_lea.vmem [#allocation8], %s454
          %457 = dma.done %s452, 64
        $region60: #{tpu_custom_call.1} parent=51 // pred_fallthru
          _
        // Predicated region
        $region61: #{tpu_custom_call.1} parent=51 // pred_check
          %p458 = pneg %p169
        $region62: #{tpu_custom_call.1} parent=51 // pred_check_branch
          %460 = sbr.rel (%p458) target = $region64
        $region63: #{tpu_custom_call.1} parent=51 // pred_region
          %s461 = sand.u32 %s27, 1
          %s462 = scalar_lea.sflag [#allocation9], %s461
          %s463 = sand.u32 %s154, 1
          %s464 = smul.addr %s463, 4
          %s465 = scalar_lea.vmem [#allocation10], %s464
          %467 = dma.done %s462, 64
        $region64: #{tpu_custom_call.1} parent=51 // pred_fallthru
          _
      $region52: #{tpu_custom_call.1} parent=5 // pred_fallthru
        _
    $region6: #{tpu_custom_call.1} parent=1 // loop_footer
      %s25 = sadd.s32 1, %s21
    $region7: #{tpu_custom_call.1} parent=1 // loop_footer_branch
      %20 = sbr.rel target = $region3
    $region8: #{tpu_custom_call.1} parent=1 // loop_exit
      _
    %468 = vsyncpa [#allocation3], 1
    %s469 = scalar_lea.sflag [#allocation3], 1
    %470 = vsyncpa %s469, 1
    %471 = vsyncpa [#allocation6], 1
    %472 = vsyncpa [#allocation4], 1
    %s473 = scalar_lea.sflag [#allocation4], 1
    %474 = vsyncpa %s473, 1
    %475 = vsyncpa [#allocation9], 1
    %s476 = scalar_lea.sflag [#allocation9], 1
    %477 = vsyncpa %s476, 1

</llo_original>
